<compile_context>
chip_gen: v7x
topology: tpu7x:2x2x1
jax: 0.10.0
libtpu: 0.0.40
codegen_flags: <defaults>
</compile_context>

<pallas_src>
import functools

import jax
import jax.numpy as jnp
from jax.experimental import pallas as pl
from jax.experimental.pallas import tpu as pltpu

HIDDEN = 256  # fixed by the module: nn.Linear(size, 256) -> nn.Linear(256, size)


def _round_up(n, m):
    return ((n + m - 1) // m) * m


# ----------------------------------------------------------------------------
# Kernels
# ----------------------------------------------------------------------------
def _generator_small_kernel(x_ref, w1_ref, b1_ref, w2_ref, b2_ref, o_ref):
    """Single-step fused y = (x @ W1 + b1) @ W2 + b2 (whole K and N in one tile)."""
    h = jnp.dot(x_ref[...], w1_ref[...], preferred_element_type=jnp.float32)
    h = h + b1_ref[...].astype(jnp.float32)
    y = jnp.dot(h.astype(jnp.bfloat16), w2_ref[...],
                preferred_element_type=jnp.float32)
    o_ref[...] = (y + b2_ref[...].astype(jnp.float32)).astype(o_ref.dtype)


def _generator_kernel(x_ref, w1_ref, b1_ref, w2_ref, b2_ref, o_ref,
                      h_ref, hbf_ref, *, gk):
    """Fused two-phase kernel over the combined phase axis t in [0, gk + gn)."""
    t = pl.program_id(1)

    # ---- phase 1: K-tiled accumulation of h = x @ W1 + b1 into f32 scratch ----
    @pl.when(t < gk)
    def _layer1():
        @pl.when(t == 0)
        def _init():
            h_ref[...] = jnp.broadcast_to(
                b1_ref[...].astype(jnp.float32), h_ref.shape
            )

        h_ref[...] += jnp.dot(
            x_ref[...], w1_ref[...], preferred_element_type=jnp.float32
        )

    # ---- cast h to bf16 exactly once per M tile (first phase-2 step) ----
    @pl.when(t == gk)
    def _cast_once():
        hbf_ref[...] = h_ref[...].astype(jnp.bfloat16)

    # ---- phase 2: one lane-dense N tile of y = h @ W2 + b2 ----
    @pl.when(t >= gk)
    def _layer2():
        y = jnp.dot(hbf_ref[...], w2_ref[...], preferred_element_type=jnp.float32)
        o_ref[...] = (y + b2_ref[...].astype(jnp.float32)).astype(o_ref.dtype)


# ----------------------------------------------------------------------------
# Host-side wrappers
# ----------------------------------------------------------------------------
def prepare_generator_params(w1, b1, w2, b2, size, *, tile_kn=512):
    """Pad + bf16-cast the weights ONCE (hoisted out of the per-call forward)."""
    TKN = min(_round_up(tile_kn, 128), _round_up(size, 128))  # lane-dense tile
    SP = _round_up(size, TKN)
    w1_p = jnp.pad(w1, ((0, SP - size), (0, 0))).astype(jnp.bfloat16)
    b1_p = b1.reshape(1, HIDDEN).astype(jnp.float32)
    w2_p = jnp.pad(w2, ((0, 0), (0, SP - size))).astype(jnp.bfloat16)
    b2_p = jnp.pad(b2.reshape(1, size), ((0, 0), (0, SP - size))).astype(jnp.float32)
    return (w1_p, b1_p, w2_p, b2_p, TKN, SP)


def generator_forward(x, prepared, dim, *, tile_m=256):
    """x: (B, H, W) float32 -> (B, H, W) float32 (same math as Generator.forward)."""
    w1_p, b1_p, w2_p, b2_p, TKN, SP = prepared
    B = x.shape[0]
    size = dim[0] * dim[1]
    x2d = x.reshape(B, size)

    # --- tiling / padding (bf16 sublane packing => TM multiple of 16) ---
    TM = min(_round_up(tile_m, 16), _round_up(B, 16))
    MP = _round_up(B, TM)
    gm = MP // TM
    gk = SP // TKN
    gn = gk

    x_p = jnp.pad(x2d, ((0, MP - B), (0, SP - size))).astype(jnp.bfloat16)

    cost = pl.CostEstimate(
        flops=4 * MP * SP * HIDDEN,  # two (MP x SP x 256) matmuls
        transcendentals=0,
        bytes_accessed=(x_p.size + gm * (w1_p.size + w2_p.size)) * 2
        + (b1_p.size + b2_p.size) * 4
        + MP * SP * 4,
    )

    vmem_limit = 32 * 1024 * 1024  # above the 16 MiB v5e default, safe on v7x (64 MiB)

    if gk == 1:
        # ---------------- fast path: one grid step per M tile -----------------
        out_p = pl.pallas_call(
            _generator_small_kernel,
            out_shape=jax.ShapeDtypeStruct((MP, SP), jnp.float32),
            grid_spec=pltpu.PrefetchScalarGridSpec(
                num_scalar_prefetch=0,
                grid=(gm,),
                in_specs=[
                    pl.BlockSpec((TM, SP), lambda i: (i, 0)),
                    pl.BlockSpec((SP, HIDDEN), lambda i: (0, 0)),
                    pl.BlockSpec((1, HIDDEN), lambda i: (0, 0)),
                    pl.BlockSpec((HIDDEN, SP), lambda i: (0, 0)),
                    pl.BlockSpec((1, SP), lambda i: (0, 0)),
                ],
                out_specs=pl.BlockSpec((TM, SP), lambda i: (i, 0)),
            ),
            compiler_params=pltpu.CompilerParams(
                dimension_semantics=("parallel",),
                vmem_limit_bytes=vmem_limit,
            ),
            cost_estimate=cost,
        )(x_p, w1_p, b1_p, w2_p, b2_p)
    else:
        # ---------------- general path: fused two-phase grid ------------------
        kernel = functools.partial(_generator_kernel, gk=gk)
        out_p = pl.pallas_call(
            kernel,
            out_shape=jax.ShapeDtypeStruct((MP, SP), jnp.float32),
            grid_spec=pltpu.PrefetchScalarGridSpec(
                num_scalar_prefetch=0,
                grid=(gm, gk + gn),
                in_specs=[
                    # x tile: advances along K during phase 1, pinned afterwards.
                    pl.BlockSpec((TM, TKN), lambda i, t: (i, jnp.minimum(t, gk - 1))),
                    # W1 K tile: advances during phase 1, pinned afterwards.
                    pl.BlockSpec((TKN, HIDDEN),
                                 lambda i, t: (jnp.minimum(t, gk - 1), 0)),
                    # b1: whole (1, 256), constant.
                    pl.BlockSpec((1, HIDDEN), lambda i, t: (0, 0)),
                    # W2 N tile: pinned at 0 during phase 1, advances during phase 2.
                    pl.BlockSpec((HIDDEN, TKN),
                                 lambda i, t: (0, jnp.maximum(t - gk, 0))),
                    # b2 N tile.
                    pl.BlockSpec((1, TKN), lambda i, t: (0, jnp.maximum(t - gk, 0))),
                ],
                out_specs=pl.BlockSpec(
                    (TM, TKN), lambda i, t: (i, jnp.maximum(t - gk, 0))
                ),
                scratch_shapes=[
                    pltpu.VMEM((TM, HIDDEN), jnp.float32),   # h accumulator (f32)
                    pltpu.VMEM((TM, HIDDEN), jnp.bfloat16),  # h cast once per M tile
                ],
            ),
            compiler_params=pltpu.CompilerParams(
                dimension_semantics=("parallel", "arbitrary"),
                vmem_limit_bytes=vmem_limit,
            ),
            cost_estimate=cost,
        )(x_p, w1_p, b1_p, w2_p, b2_p)

    return out_p[:B, :size].reshape(B, dim[0], dim[1])


def init_params(key, size, hidden=HIDDEN):
    """Deterministic init mimicking nn.Linear default (uniform(-1/sqrt(fan_in), +))."""
    k1, k2, k3, k4 = jax.random.split(key, 4)
    bound1 = 1.0 / jnp.sqrt(size)
    bound2 = 1.0 / jnp.sqrt(hidden)
    # weights stored as (in, out) for y = x @ W + b
    w1 = jax.random.uniform(k1, (size, hidden), jnp.float32, -bound1, bound1)
    b1 = jax.random.uniform(k2, (1, hidden), jnp.float32, -bound1, bound1)
    w2 = jax.random.uniform(k3, (hidden, size), jnp.float32, -bound2, bound2)
    b2 = jax.random.uniform(k4, (1, size), jnp.float32, -bound2, bound2)
    return w1, b1, w2, b2


def _reference(x, w1, b1, w2, b2, dim):
    """Pure-JAX reference with matching numerics (bf16 operands, f32 accumulation)."""
    B = x.shape[0]
    size = dim[0] * dim[1]
    x2d = x.reshape(B, size)
    h = jnp.dot(x2d.astype(jnp.bfloat16), w1.astype(jnp.bfloat16),
                preferred_element_type=jnp.float32) + b1
    y = jnp.dot(h.astype(jnp.bfloat16), w2.astype(jnp.bfloat16),
                preferred_element_type=jnp.float32) + b2
    return y.reshape(B, dim[0], dim[1])


if __name__ == "__main__":
    key = jax.random.PRNGKey(0)

    # ---- case 1: the module's default-style tiny config (fast single-step path) ----
    dim1 = (16, 16)          # size = 256
    B1 = 2
    size1 = dim1[0] * dim1[1]
    k1, k2, key = jax.random.split(key, 3)
    x1 = jax.random.normal(k1, (B1,) + dim1, jnp.float32)
    w1a, b1a, w2a, b2a = init_params(k2, size1)
    prep1 = prepare_generator_params(w1a, b1a, w2a, b2a, size1)   # hoisted weight prep
    out1 = jax.block_until_ready(generator_forward(x1, prep1, dim1))
    ref1 = _reference(x1, w1a, b1a, w2a, b2a, dim1)
    assert out1.shape == (B1,) + dim1, out1.shape
    assert jnp.allclose(out1, ref1, atol=1e-2, rtol=1e-2), \
        f"fast-path mismatch: {float(jnp.max(jnp.abs(out1 - ref1)))}"

    # ---- case 2: larger spatial size to exercise the general K/N-tiled path ----
    dim2 = (32, 40)          # size = 1280 > tile_kn=512 -> gk = gn = 3
    B2 = 8
    size2 = dim2[0] * dim2[1]
    k3, k4 = jax.random.split(key)
    x2 = jax.random.normal(k3, (B2,) + dim2, jnp.float32)
    w1b, b1b, w2b, b2b = init_params(k4, size2)
    prep2 = prepare_generator_params(w1b, b1b, w2b, b2b, size2)
    out2 = jax.block_until_ready(generator_forward(x2, prep2, dim2))
    ref2 = _reference(x2, w1b, b1b, w2b, b2b, dim2)
    assert out2.shape == (B2,) + dim2, out2.shape
    assert jnp.allclose(out2, ref2, atol=2e-2, rtol=2e-2), \
        f"general-path mismatch: {float(jnp.max(jnp.abs(out2 - ref2)))}"

    print("KERNEL_OK")
</pallas_src>

<mosaic_0001>
module attributes {stable_mosaic.version = 11 : i64} {
  func.func @_generator_small_kernel(%arg0: i32, %arg1: memref<16x256xbf16, #tpu.memory_space<vmem>>, %arg2: memref<256x256xbf16, #tpu.memory_space<vmem>>, %arg3: memref<1x256xf32, #tpu.memory_space<vmem>>, %arg4: memref<256x256xbf16, #tpu.memory_space<vmem>>, %arg5: memref<1x256xf32, #tpu.memory_space<vmem>>, %arg6: memref<16x256xf32, #tpu.memory_space<vmem>>) attributes {dimension_semantics = [#tpu.dimension_semantics<parallel>], iteration_bounds = array<i64: 1>, scalar_prefetch = 0 : i64, scratch_operands = 0 : i64, tpu.core_type = #tpu.core_type<tc>, window_params = [{transform_indices = @transform_0, window_bounds = array<i64: 16, 256>}, {pipeline_mode = #tpu.pipeline_mode<synchronous>, transform_indices = @transform_1, window_bounds = array<i64: 256, 256>}, {pipeline_mode = #tpu.pipeline_mode<synchronous>, transform_indices = @transform_2, window_bounds = array<i64: 1, 256>}, {pipeline_mode = #tpu.pipeline_mode<synchronous>, transform_indices = @transform_3, window_bounds = array<i64: 256, 256>}, {pipeline_mode = #tpu.pipeline_mode<synchronous>, transform_indices = @transform_4, window_bounds = array<i64: 1, 256>}, {transform_indices = @transform_5, window_bounds = array<i64: 16, 256>}]} {
    %c0 = arith.constant 0 : index
    %c0_0 = arith.constant 0 : index
    %0 = vector.load %arg1[%c0, %c0_0] : memref<16x256xbf16, #tpu.memory_space<vmem>>, vector<16x256xbf16>
    %c0_1 = arith.constant 0 : index
    %c0_2 = arith.constant 0 : index
    %1 = vector.load %arg2[%c0_1, %c0_2] : memref<256x256xbf16, #tpu.memory_space<vmem>>, vector<256x256xbf16>
    %cst = arith.constant dense<0.000000e+00> : vector<16x256xf32>
    %2 = tpu.matmul %0, %1, %cst {dimension_numbers = #tpu.dot_dimension_numbers<[1], [0], [0], [1], [0, 0, 1, 1], [], []>} : vector<16x256xbf16>, vector<256x256xbf16>, vector<16x256xf32> -> vector<16x256xf32>
    %c0_3 = arith.constant 0 : index
    %c0_4 = arith.constant 0 : index
    %3 = vector.load %arg3[%c0_3, %c0_4] : memref<1x256xf32, #tpu.memory_space<vmem>>, vector<1x256xf32>
    %4 = vector.broadcast %3 : vector<1x256xf32> to vector<16x256xf32>
    %5 = arith.addf %2, %4 : vector<16x256xf32>
    %6 = arith.truncf %5 : vector<16x256xf32> to vector<16x256xbf16>
    %c0_5 = arith.constant 0 : index
    %c0_6 = arith.constant 0 : index
    %7 = vector.load %arg4[%c0_5, %c0_6] : memref<256x256xbf16, #tpu.memory_space<vmem>>, vector<256x256xbf16>
    %cst_7 = arith.constant dense<0.000000e+00> : vector<16x256xf32>
    %8 = tpu.matmul %6, %7, %cst_7 {dimension_numbers = #tpu.dot_dimension_numbers<[1], [0], [0], [1], [0, 0, 1, 1], [], []>} : vector<16x256xbf16>, vector<256x256xbf16>, vector<16x256xf32> -> vector<16x256xf32>
    %c0_8 = arith.constant 0 : index
    %c0_9 = arith.constant 0 : index
    %9 = vector.load %arg5[%c0_8, %c0_9] : memref<1x256xf32, #tpu.memory_space<vmem>>, vector<1x256xf32>
    %10 = vector.broadcast %9 : vector<1x256xf32> to vector<16x256xf32>
    %11 = arith.addf %8, %10 : vector<16x256xf32>
    %c0_10 = arith.constant 0 : index
    %c0_11 = arith.constant 0 : index
    %12 = vector.load %arg6[%c0_10, %c0_11] : memref<16x256xf32, #tpu.memory_space<vmem>>, vector<16x256xf32>
    tpu.vector_store %arg6[%c0_10, %c0_11], %11 {strides = array<i32>} : memref<16x256xf32, #tpu.memory_space<vmem>>, vector<16x256xf32>,
    return
  }
  func.func @transform_0(%arg0: i32) -> (i32, i32) {
    %c0_i32 = arith.constant 0 : i32
    %c0_i32_0 = arith.constant 0 : i32
    return %arg0, %c0_i32 : i32, i32
  }
  func.func @transform_1(%arg0: i32) -> (i32, i32) {
    %c0_i32 = arith.constant 0 : i32
    %c0_i32_0 = arith.constant 0 : i32
    %c0_i32_1 = arith.constant 0 : i32
    return %c0_i32, %c0_i32_0 : i32, i32
  }
  func.func @transform_2(%arg0: i32) -> (i32, i32) {
    %c0_i32 = arith.constant 0 : i32
    %c0_i32_0 = arith.constant 0 : i32
    %c0_i32_1 = arith.constant 0 : i32
    return %c0_i32, %c0_i32_0 : i32, i32
  }
  func.func @transform_3(%arg0: i32) -> (i32, i32) {
    %c0_i32 = arith.constant 0 : i32
    %c0_i32_0 = arith.constant 0 : i32
    %c0_i32_1 = arith.constant 0 : i32
    return %c0_i32, %c0_i32_0 : i32, i32
  }
  func.func @transform_4(%arg0: i32) -> (i32, i32) {
    %c0_i32 = arith.constant 0 : i32
    %c0_i32_0 = arith.constant 0 : i32
    %c0_i32_1 = arith.constant 0 : i32
    return %c0_i32, %c0_i32_0 : i32, i32
  }
  func.func @transform_5(%arg0: i32) -> (i32, i32) {
    %c0_i32 = arith.constant 0 : i32
    %c0_i32_0 = arith.constant 0 : i32
    return %arg0, %c0_i32 : i32, i32
  }
}

</mosaic_0001>

<llo_original>
// kernel: tpu_custom_call.1
$region0: #{tpu_custom_call.1}
  #allocation0 [shape = 'u32[]', space=smem, size = 0x4, offset = 0x4, fixed_abs, tag = 'smem constant byte address 0x4 - core index']
  #allocation1 [shape = 'u32[144,128]{1,0:T(1,128)}', space=vmem, size = 0x12000, scoped, tag = 'internal scratch']
  %s0 = inlined_call_operand.hbm [shape: bf16[16,256], index: 0, kind: input, shape index: {}]
  %s1 = inlined_call_operand.hbm [shape: bf16[256,256], index: 1, kind: input, shape index: {}]
  %s2 = inlined_call_operand.vmem [shape: f32[1,256], index: 2, kind: input, shape index: {}]
  %s3 = inlined_call_operand.hbm [shape: bf16[256,256], index: 3, kind: input, shape index: {}]
  %s4 = inlined_call_operand.vmem [shape: f32[1,256], index: 4, kind: input, shape index: {}]
  %s5 = inlined_call_operand.hbm [shape: f32[16,256], index: 5, kind: output, shape index: {}]
  %s6 = sld [smem:[#allocation0]]
  $region42: #{tpu_custom_call.1} parent=0
    _
  %s8 = ssub.s32 1, %s6
  %s9 = scalar_select 0, %s8, %s6
  $region1: #{tpu_custom_call.1} parent=0
    #allocation2 [shape = 'u8[8192]{0}', space=vmem, size = 0x2000, scoped, tag = 'input window, operand 0, single buffered']
    #allocation3 [shape = 's32[1]{0}', space=sflag, size = 0x4, scoped, tag = 'scoped memory for tpu_custom_call.1']
    #allocation4 [shape = 's32[1]{0}', space=sflag, size = 0x4, scoped, tag = 'scoped memory for tpu_custom_call.1']
    #allocation5 [shape = 'u8[131072]{0}', space=vmem, size = 0x20000, scoped, tag = 'input window, operand 1, single buffered']
    #allocation6 [shape = 's32[1]{0}', space=sflag, size = 0x4, scoped, tag = 'scoped memory for tpu_custom_call.1']
    #allocation7 [shape = 'u8[131072]{0}', space=vmem, size = 0x20000, scoped, tag = 'input window, operand 3, single buffered']
    #allocation8 [shape = 'u8[16384]{0}', space=vmem, size = 0x4000, scoped, tag = 'output window, operand 0, single buffered']
    %10 = vsyncpa [#allocation3], 0
    %11 = vsyncpa [#allocation6], 0
    %12 = vsyncpa [#allocation4], 0
    // Predicated region
    $region2: #{tpu_custom_call.1} parent=1 // pred_check
      _
    $region3: #{tpu_custom_call.1} parent=1 // pred_check_branch
      %14 = sbr.rel (0) target = $region5
    $region4: #{tpu_custom_call.1} parent=1 // pred_region
      %s16 = ssub.s32 256, 256
      %17 = vsyncadd [#allocation3], %s16
      %s18 = sshll.u32 [#allocation2], 4
      %s19 = int_to_ptr.vmem [resolvable:$true] %s18
      %24 = dma.hbm_to_vmem [thread:$0]  %s0, 256, %s19, [#allocation3], 128, 128, 8
    $region5: #{tpu_custom_call.1} parent=1 // pred_fallthru
      _
    // Predicated region
    $region6: #{tpu_custom_call.1} parent=1 // pred_check
      _
    $region7: #{tpu_custom_call.1} parent=1 // pred_check_branch
      %26 = sbr.rel (0) target = $region9
    $region8: #{tpu_custom_call.1} parent=1 // pred_region
      %s28 = ssub.s32 4096, 4096
      %29 = vsyncadd [#allocation6], %s28
      %s30 = sshll.u32 [#allocation5], 4
      %s31 = int_to_ptr.vmem [resolvable:$true] %s30
      %36 = dma.hbm_to_vmem [thread:$0]  %s1, 4096, %s31, [#allocation6], 128, 128, 8
    $region9: #{tpu_custom_call.1} parent=1 // pred_fallthru
      _
    // Predicated region
    $region10: #{tpu_custom_call.1} parent=1 // pred_check
      _
    $region11: #{tpu_custom_call.1} parent=1 // pred_check_branch
      %38 = sbr.rel (0) target = $region13
    $region12: #{tpu_custom_call.1} parent=1 // pred_region
      _
    $region13: #{tpu_custom_call.1} parent=1 // pred_fallthru
      _
    // Predicated region
    $region14: #{tpu_custom_call.1} parent=1 // pred_check
      _
    $region15: #{tpu_custom_call.1} parent=1 // pred_check_branch
      %40 = sbr.rel (0) target = $region17
    $region16: #{tpu_custom_call.1} parent=1 // pred_region
      %s42 = ssub.s32 4096, 4096
      %43 = vsyncadd [#allocation6], %s42
      %s44 = sshll.u32 [#allocation7], 4
      %s45 = int_to_ptr.vmem [resolvable:$true] %s44
      %50 = dma.hbm_to_vmem [thread:$0]  %s3, 4096, %s45, [#allocation6], 128, 128, 8
    $region17: #{tpu_custom_call.1} parent=1 // pred_fallthru
      _
    // Predicated region
    $region18: #{tpu_custom_call.1} parent=1 // pred_check
      _
    $region19: #{tpu_custom_call.1} parent=1 // pred_check_branch
      %52 = sbr.rel (0) target = $region21
    $region20: #{tpu_custom_call.1} parent=1 // pred_region
      _
    $region21: #{tpu_custom_call.1} parent=1 // pred_fallthru
      _
    // Predicated region
    $region22: #{tpu_custom_call.1} parent=1 // pred_check
      _
    $region23: #{tpu_custom_call.1} parent=1 // pred_check_branch
      %54 = sbr.rel (0) target = $region25
    $region24: #{tpu_custom_call.1} parent=1 // pred_region
      %55 = dma.done [#allocation3], 256
    $region25: #{tpu_custom_call.1} parent=1 // pred_fallthru
      _
    // Predicated region
    $region26: #{tpu_custom_call.1} parent=1 // pred_check
      _
    $region27: #{tpu_custom_call.1} parent=1 // pred_check_branch
      %57 = sbr.rel (0) target = $region29
    $region28: #{tpu_custom_call.1} parent=1 // pred_region
      %58 = dma.done [#allocation6], 4096
    $region29: #{tpu_custom_call.1} parent=1 // pred_fallthru
      _
    // Predicated region
    $region30: #{tpu_custom_call.1} parent=1 // pred_check
      _
    $region31: #{tpu_custom_call.1} parent=1 // pred_check_branch
      %60 = sbr.rel (0) target = $region33
    $region32: #{tpu_custom_call.1} parent=1 // pred_region
      %61 = dma.done [#allocation6], 4096
    $region33: #{tpu_custom_call.1} parent=1 // pred_fallthru
      _
    %v62 = vld [vmem:[#allocation2] sm:$0xff]
    %v63 = vld [vmem:[#allocation2 + $0x8] sm:$0xff]
    %v64 = vld [vmem:[#allocation5] sm:$0xff]
    %v65 = vld [vmem:[#allocation5 + $0x8] sm:$0xff]
    %v66 = vld [vmem:[#allocation5 + $0x10] sm:$0xff]
    %v67 = vld [vmem:[#allocation5 + $0x18] sm:$0xff]
    %v68 = vld [vmem:[#allocation5 + $0x20] sm:$0xff]
    %v69 = vld [vmem:[#allocation5 + $0x28] sm:$0xff]
    %v70 = vld [vmem:[#allocation5 + $0x30] sm:$0xff]
    %v71 = vld [vmem:[#allocation5 + $0x38] sm:$0xff]
    %v72 = vld [vmem:[#allocation5 + $0x40] sm:$0xff]
    %v73 = vld [vmem:[#allocation5 + $0x48] sm:$0xff]
    %v74 = vld [vmem:[#allocation5 + $0x50] sm:$0xff]
    %v75 = vld [vmem:[#allocation5 + $0x58] sm:$0xff]
    %v76 = vld [vmem:[#allocation5 + $0x60] sm:$0xff]
    %v77 = vld [vmem:[#allocation5 + $0x68] sm:$0xff]
    %v78 = vld [vmem:[#allocation5 + $0x70] sm:$0xff]
    %v79 = vld [vmem:[#allocation5 + $0x78] sm:$0xff]
    %v80 = vld [vmem:[#allocation5 + $0x80] sm:$0xff]
    %v81 = vld [vmem:[#allocation5 + $0x88] sm:$0xff]
    %v82 = vld [vmem:[#allocation5 + $0x90] sm:$0xff]
    %v83 = vld [vmem:[#allocation5 + $0x98] sm:$0xff]
    %v84 = vld [vmem:[#allocation5 + $0xa0] sm:$0xff]
    %v85 = vld [vmem:[#allocation5 + $0xa8] sm:$0xff]
    %v86 = vld [vmem:[#allocation5 + $0xb0] sm:$0xff]
    %v87 = vld [vmem:[#allocation5 + $0xb8] sm:$0xff]
    %v88 = vld [vmem:[#allocation5 + $0xc0] sm:$0xff]
    %v89 = vld [vmem:[#allocation5 + $0xc8] sm:$0xff]
    %v90 = vld [vmem:[#allocation5 + $0xd0] sm:$0xff]
    %v91 = vld [vmem:[#allocation5 + $0xd8] sm:$0xff]
    %v92 = vld [vmem:[#allocation5 + $0xe0] sm:$0xff]
    %v93 = vld [vmem:[#allocation5 + $0xe8] sm:$0xff]
    %v94 = vld [vmem:[#allocation5 + $0xf0] sm:$0xff]
    %v95 = vld [vmem:[#allocation5 + $0xf8] sm:$0xff]
    %v96 = vld [vmem:[%s2] sm:$0x3]
    %v98 = vlaneseq
    %v99 = vshrl.u32 %v98, 7
    %v100 = vsub.s32 0, %v99
    %v101 = vrot.slane %v96, %v100
    %v102 = vlaneseq
    %v103 = vshrl.u32 %v102, 7
    %v104 = vsub.s32 1, %v103
    %v105 = vrot.slane %v96, %v104
    %v110 = vunpack.c.l.b16 %v62
    %v111 = vunpack.c.h.b16 %v62
    %v112 = vunpack.c.l.b16 %v63
    %v113 = vunpack.c.h.b16 %v63
    %v114 = vpack.c.b16 %v112, %v110
    %v115 = vpack.c.b16 %v113, %v111
    %v150 = vunpack.c.l.b16 %v64
    %v151 = vunpack.c.h.b16 %v64
    %v152 = vunpack.c.l.b16 %v65
    %v153 = vunpack.c.h.b16 %v65
    %v154 = vunpack.c.l.b16 %v66
    %v155 = vunpack.c.h.b16 %v66
    %v156 = vunpack.c.l.b16 %v67
    %v157 = vunpack.c.h.b16 %v67
    %v158 = vunpack.c.l.b16 %v68
    %v159 = vunpack.c.h.b16 %v68
    %v160 = vunpack.c.l.b16 %v69
    %v161 = vunpack.c.h.b16 %v69
    %v162 = vunpack.c.l.b16 %v70
    %v163 = vunpack.c.h.b16 %v70
    %v164 = vunpack.c.l.b16 %v71
    %v165 = vunpack.c.h.b16 %v71
    %v166 = vunpack.c.l.b16 %v72
    %v167 = vunpack.c.h.b16 %v72
    %v168 = vunpack.c.l.b16 %v73
    %v169 = vunpack.c.h.b16 %v73
    %v170 = vunpack.c.l.b16 %v74
    %v171 = vunpack.c.h.b16 %v74
    %v172 = vunpack.c.l.b16 %v75
    %v173 = vunpack.c.h.b16 %v75
    %v174 = vunpack.c.l.b16 %v76
    %v175 = vunpack.c.h.b16 %v76
    %v176 = vunpack.c.l.b16 %v77
    %v177 = vunpack.c.h.b16 %v77
    %v178 = vunpack.c.l.b16 %v78
    %v179 = vunpack.c.h.b16 %v78
    %v180 = vunpack.c.l.b16 %v79
    %v181 = vunpack.c.h.b16 %v79
    %v182 = vunpack.c.l.b16 %v80
    %v183 = vunpack.c.h.b16 %v80
    %v184 = vunpack.c.l.b16 %v81
    %v185 = vunpack.c.h.b16 %v81
    %v186 = vunpack.c.l.b16 %v82
    %v187 = vunpack.c.h.b16 %v82
    %v188 = vunpack.c.l.b16 %v83
    %v189 = vunpack.c.h.b16 %v83
    %v190 = vunpack.c.l.b16 %v84
    %v191 = vunpack.c.h.b16 %v84
    %v192 = vunpack.c.l.b16 %v85
    %v193 = vunpack.c.h.b16 %v85
    %v194 = vunpack.c.l.b16 %v86
    %v195 = vunpack.c.h.b16 %v86
    %v196 = vunpack.c.l.b16 %v87
    %v197 = vunpack.c.h.b16 %v87
    %v198 = vunpack.c.l.b16 %v88
    %v199 = vunpack.c.h.b16 %v88
    %v200 = vunpack.c.l.b16 %v89
    %v201 = vunpack.c.h.b16 %v89
    %v202 = vunpack.c.l.b16 %v90
    %v203 = vunpack.c.h.b16 %v90
    %v204 = vunpack.c.l.b16 %v91
    %v205 = vunpack.c.h.b16 %v91
    %v206 = vunpack.c.l.b16 %v92
    %v207 = vunpack.c.h.b16 %v92
    %v208 = vunpack.c.l.b16 %v93
    %v209 = vunpack.c.h.b16 %v93
    %v210 = vunpack.c.l.b16 %v94
    %v211 = vunpack.c.h.b16 %v94
    %v212 = vunpack.c.l.b16 %v95
    %v213 = vunpack.c.h.b16 %v95
    %v214 = vpack.c.b16 %v152, %v150
    %v215 = vpack.c.b16 %v153, %v151
    %v216 = vpack.c.b16 %v156, %v154
    %v217 = vpack.c.b16 %v157, %v155
    %v218 = vpack.c.b16 %v160, %v158
    %v219 = vpack.c.b16 %v161, %v159
    %v220 = vpack.c.b16 %v164, %v162
    %v221 = vpack.c.b16 %v165, %v163
    %v222 = vpack.c.b16 %v168, %v166
    %v223 = vpack.c.b16 %v169, %v167
    %v224 = vpack.c.b16 %v172, %v170
    %v225 = vpack.c.b16 %v173, %v171
    %v226 = vpack.c.b16 %v176, %v174
    %v227 = vpack.c.b16 %v177, %v175
    %v228 = vpack.c.b16 %v180, %v178
    %v229 = vpack.c.b16 %v181, %v179
    %v230 = vpack.c.b16 %v184, %v182
    %v231 = vpack.c.b16 %v185, %v183
    %v232 = vpack.c.b16 %v188, %v186
    %v233 = vpack.c.b16 %v189, %v187
    %v234 = vpack.c.b16 %v192, %v190
    %v235 = vpack.c.b16 %v193, %v191
    %v236 = vpack.c.b16 %v196, %v194
    %v237 = vpack.c.b16 %v197, %v195
    %v238 = vpack.c.b16 %v200, %v198
    %v239 = vpack.c.b16 %v201, %v199
    %v240 = vpack.c.b16 %v204, %v202
    %v241 = vpack.c.b16 %v205, %v203
    %v242 = vpack.c.b16 %v208, %v206
    %v243 = vpack.c.b16 %v209, %v207
    %v244 = vpack.c.b16 %v212, %v210
    %v245 = vpack.c.b16 %v213, %v211
    %278 = vmatprep.subr.bf16.mxu0 %v215
    %279 = vmatpush1.bf16.msra.mxu0 %v214
    %280 = vmatprep.subr.bf16.mxu0 %v217
    %281 = vmatpush1.bf16.msra.mxu0 %v216
    %282 = vmatprep.subr.bf16.mxu0 %v219
    %283 = vmatpush1.bf16.msra.mxu0 %v218
    %284 = vmatprep.subr.bf16.mxu0 %v221
    %285 = vmatpush1.bf16.msra.mxu0 %v220
    %286 = vmatprep.subr.bf16.mxu0 %v223
    %287 = vmatpush1.bf16.msra.mxu0 %v222
    %288 = vmatprep.subr.bf16.mxu0 %v225
    %289 = vmatpush1.bf16.msra.mxu0 %v224
    %290 = vmatprep.subr.bf16.mxu0 %v227
    %291 = vmatpush1.bf16.msra.mxu0 %v226
    %292 = vmatprep.subr.bf16.mxu0 %v229
    %293 = vmatpush1.bf16.msra.mxu0 %v228
    %294 = vmatprep.subr.bf16.mxu0 %v231
    %295 = vmatpush1.bf16.msra.mxu0 %v230
    %296 = vmatprep.subr.bf16.mxu0 %v233
    %297 = vmatpush1.bf16.msra.mxu0 %v232
    %298 = vmatprep.subr.bf16.mxu0 %v235
    %299 = vmatpush1.bf16.msra.mxu0 %v234
    %300 = vmatprep.subr.bf16.mxu0 %v237
    %301 = vmatpush1.bf16.msra.mxu0 %v236
    %302 = vmatprep.subr.bf16.mxu0 %v239
    %303 = vmatpush1.bf16.msra.mxu0 %v238
    %304 = vmatprep.subr.bf16.mxu0 %v241
    %305 = vmatpush1.bf16.msra.mxu0 %v240
    %306 = vmatprep.subr.bf16.mxu0 %v243
    %307 = vmatpush1.bf16.msra.mxu0 %v242
    %308 = vmatprep.subr.bf16.mxu0 %v245
    %309 = vmatpush1.bf16.msra.mxu0 %v244
    %310 = vmatprep.mubr.bf16.mxu0 %v115
    %311 = vmatmul.mubr.bf16.gmra.mrb[0].mxu0 %v114
    %v312 = vpop.f32.mrb[0].mxu0
    %v313 = vadd.f32 %v101, %v312
    %v314 = vpop.f32.mrb[0].mxu0
    %v315 = vadd.f32 %v105, %v314
    %v316 = vpop.f32.mrb[0].mxu0
    %v317 = vadd.f32 %v101, %v316
    %v318 = vpop.f32.mrb[0].mxu0
    %v319 = vadd.f32 %v105, %v318
    %320 = vdwg.mxu0
    %v321 = vpack.c.bf16 %v317, %v313
    %v322 = vpack.c.bf16 %v319, %v315
    %v323 = vld [vmem:[#allocation7] sm:$0xff]
    %v324 = vld [vmem:[#allocation7 + $0x8] sm:$0xff]
    %v325 = vld [vmem:[#allocation7 + $0x10] sm:$0xff]
    %v326 = vld [vmem:[#allocation7 + $0x18] sm:$0xff]
    %v327 = vld [vmem:[#allocation7 + $0x20] sm:$0xff]
    %v328 = vld [vmem:[#allocation7 + $0x28] sm:$0xff]
    %v329 = vld [vmem:[#allocation7 + $0x30] sm:$0xff]
    %v330 = vld [vmem:[#allocation7 + $0x38] sm:$0xff]
    %v331 = vld [vmem:[#allocation7 + $0x40] sm:$0xff]
    %v332 = vld [vmem:[#allocation7 + $0x48] sm:$0xff]
    %v333 = vld [vmem:[#allocation7 + $0x50] sm:$0xff]
    %v334 = vld [vmem:[#allocation7 + $0x58] sm:$0xff]
    %v335 = vld [vmem:[#allocation7 + $0x60] sm:$0xff]
    %v336 = vld [vmem:[#allocation7 + $0x68] sm:$0xff]
    %v337 = vld [vmem:[#allocation7 + $0x70] sm:$0xff]
    %v338 = vld [vmem:[#allocation7 + $0x78] sm:$0xff]
    %v339 = vld [vmem:[#allocation7 + $0x80] sm:$0xff]
    %v340 = vld [vmem:[#allocation7 + $0x88] sm:$0xff]
    %v341 = vld [vmem:[#allocation7 + $0x90] sm:$0xff]
    %v342 = vld [vmem:[#allocation7 + $0x98] sm:$0xff]
    %v343 = vld [vmem:[#allocation7 + $0xa0] sm:$0xff]
    %v344 = vld [vmem:[#allocation7 + $0xa8] sm:$0xff]
    %v345 = vld [vmem:[#allocation7 + $0xb0] sm:$0xff]
    %v346 = vld [vmem:[#allocation7 + $0xb8] sm:$0xff]
    %v347 = vld [vmem:[#allocation7 + $0xc0] sm:$0xff]
    %v348 = vld [vmem:[#allocation7 + $0xc8] sm:$0xff]
    %v349 = vld [vmem:[#allocation7 + $0xd0] sm:$0xff]
    %v350 = vld [vmem:[#allocation7 + $0xd8] sm:$0xff]
    %v351 = vld [vmem:[#allocation7 + $0xe0] sm:$0xff]
    %v352 = vld [vmem:[#allocation7 + $0xe8] sm:$0xff]
    %v353 = vld [vmem:[#allocation7 + $0xf0] sm:$0xff]
    %v354 = vld [vmem:[#allocation7 + $0xf8] sm:$0xff]
    %v355 = vld [vmem:[%s4] sm:$0x3]
    %v357 = vlaneseq
    %v358 = vshrl.u32 %v357, 7
    %v359 = vsub.s32 0, %v358
    %v360 = vrot.slane %v355, %v359
    %v361 = vlaneseq
    %v362 = vshrl.u32 %v361, 7
    %v363 = vsub.s32 1, %v362
    %v364 = vrot.slane %v355, %v363
    %v399 = vunpack.c.l.b16 %v323
    %v400 = vunpack.c.h.b16 %v323
    %v401 = vunpack.c.l.b16 %v324
    %v402 = vunpack.c.h.b16 %v324
    %v403 = vunpack.c.l.b16 %v325
    %v404 = vunpack.c.h.b16 %v325
    %v405 = vunpack.c.l.b16 %v326
    %v406 = vunpack.c.h.b16 %v326
    %v407 = vunpack.c.l.b16 %v327
    %v408 = vunpack.c.h.b16 %v327
    %v409 = vunpack.c.l.b16 %v328
    %v410 = vunpack.c.h.b16 %v328
    %v411 = vunpack.c.l.b16 %v329
    %v412 = vunpack.c.h.b16 %v329
    %v413 = vunpack.c.l.b16 %v330
    %v414 = vunpack.c.h.b16 %v330
    %v415 = vunpack.c.l.b16 %v331
    %v416 = vunpack.c.h.b16 %v331
    %v417 = vunpack.c.l.b16 %v332
    %v418 = vunpack.c.h.b16 %v332
    %v419 = vunpack.c.l.b16 %v333
    %v420 = vunpack.c.h.b16 %v333
    %v421 = vunpack.c.l.b16 %v334
    %v422 = vunpack.c.h.b16 %v334
    %v423 = vunpack.c.l.b16 %v335
    %v424 = vunpack.c.h.b16 %v335
    %v425 = vunpack.c.l.b16 %v336
    %v426 = vunpack.c.h.b16 %v336
    %v427 = vunpack.c.l.b16 %v337
    %v428 = vunpack.c.h.b16 %v337
    %v429 = vunpack.c.l.b16 %v338
    %v430 = vunpack.c.h.b16 %v338
    %v431 = vunpack.c.l.b16 %v339
    %v432 = vunpack.c.h.b16 %v339
    %v433 = vunpack.c.l.b16 %v340
    %v434 = vunpack.c.h.b16 %v340
    %v435 = vunpack.c.l.b16 %v341
    %v436 = vunpack.c.h.b16 %v341
    %v437 = vunpack.c.l.b16 %v342
    %v438 = vunpack.c.h.b16 %v342
    %v439 = vunpack.c.l.b16 %v343
    %v440 = vunpack.c.h.b16 %v343
    %v441 = vunpack.c.l.b16 %v344
    %v442 = vunpack.c.h.b16 %v344
    %v443 = vunpack.c.l.b16 %v345
    %v444 = vunpack.c.h.b16 %v345
    %v445 = vunpack.c.l.b16 %v346
    %v446 = vunpack.c.h.b16 %v346
    %v447 = vunpack.c.l.b16 %v347
    %v448 = vunpack.c.h.b16 %v347
    %v449 = vunpack.c.l.b16 %v348
    %v450 = vunpack.c.h.b16 %v348
    %v451 = vunpack.c.l.b16 %v349
    %v452 = vunpack.c.h.b16 %v349
    %v453 = vunpack.c.l.b16 %v350
    %v454 = vunpack.c.h.b16 %v350
    %v455 = vunpack.c.l.b16 %v351
    %v456 = vunpack.c.h.b16 %v351
    %v457 = vunpack.c.l.b16 %v352
    %v458 = vunpack.c.h.b16 %v352
    %v459 = vunpack.c.l.b16 %v353
    %v460 = vunpack.c.h.b16 %v353
    %v461 = vunpack.c.l.b16 %v354
    %v462 = vunpack.c.h.b16 %v354
    %v463 = vpack.c.b16 %v401, %v399
    %v464 = vpack.c.b16 %v402, %v400
    %v465 = vpack.c.b16 %v405, %v403
    %v466 = vpack.c.b16 %v406, %v404
    %v467 = vpack.c.b16 %v409, %v407
    %v468 = vpack.c.b16 %v410, %v408
    %v469 = vpack.c.b16 %v413, %v411
    %v470 = vpack.c.b16 %v414, %v412
    %v471 = vpack.c.b16 %v417, %v415
    %v472 = vpack.c.b16 %v418, %v416
    %v473 = vpack.c.b16 %v421, %v419
    %v474 = vpack.c.b16 %v422, %v420
    %v475 = vpack.c.b16 %v425, %v423
    %v476 = vpack.c.b16 %v426, %v424
    %v477 = vpack.c.b16 %v429, %v427
    %v478 = vpack.c.b16 %v430, %v428
    %v479 = vpack.c.b16 %v433, %v431
    %v480 = vpack.c.b16 %v434, %v432
    %v481 = vpack.c.b16 %v437, %v435
    %v482 = vpack.c.b16 %v438, %v436
    %v483 = vpack.c.b16 %v441, %v439
    %v484 = vpack.c.b16 %v442, %v440
    %v485 = vpack.c.b16 %v445, %v443
    %v486 = vpack.c.b16 %v446, %v444
    %v487 = vpack.c.b16 %v449, %v447
    %v488 = vpack.c.b16 %v450, %v448
    %v489 = vpack.c.b16 %v453, %v451
    %v490 = vpack.c.b16 %v454, %v452
    %v491 = vpack.c.b16 %v457, %v455
    %v492 = vpack.c.b16 %v458, %v456
    %v493 = vpack.c.b16 %v461, %v459
    %v494 = vpack.c.b16 %v462, %v460
    %527 = vmatprep.subr.bf16.mxu0 %v464
    %528 = vmatpush1.bf16.msra.mxu0 %v463
    %529 = vmatprep.subr.bf16.mxu0 %v466
    %530 = vmatpush1.bf16.msra.mxu0 %v465
    %531 = vmatprep.subr.bf16.mxu0 %v468
    %532 = vmatpush1.bf16.msra.mxu0 %v467
    %533 = vmatprep.subr.bf16.mxu0 %v470
    %534 = vmatpush1.bf16.msra.mxu0 %v469
    %535 = vmatprep.subr.bf16.mxu0 %v472
    %536 = vmatpush1.bf16.msra.mxu0 %v471
    %537 = vmatprep.subr.bf16.mxu0 %v474
    %538 = vmatpush1.bf16.msra.mxu0 %v473
    %539 = vmatprep.subr.bf16.mxu0 %v476
    %540 = vmatpush1.bf16.msra.mxu0 %v475
    %541 = vmatprep.subr.bf16.mxu0 %v478
    %542 = vmatpush1.bf16.msra.mxu0 %v477
    %543 = vmatprep.subr.bf16.mxu0 %v480
    %544 = vmatpush1.bf16.msra.mxu0 %v479
    %545 = vmatprep.subr.bf16.mxu0 %v482
    %546 = vmatpush1.bf16.msra.mxu0 %v481
    %547 = vmatprep.subr.bf16.mxu0 %v484
    %548 = vmatpush1.bf16.msra.mxu0 %v483
    %549 = vmatprep.subr.bf16.mxu0 %v486
    %550 = vmatpush1.bf16.msra.mxu0 %v485
    %551 = vmatprep.subr.bf16.mxu0 %v488
    %552 = vmatpush1.bf16.msra.mxu0 %v487
    %553 = vmatprep.subr.bf16.mxu0 %v490
    %554 = vmatpush1.bf16.msra.mxu0 %v489
    %555 = vmatprep.subr.bf16.mxu0 %v492
    %556 = vmatpush1.bf16.msra.mxu0 %v491
    %557 = vmatprep.subr.bf16.mxu0 %v494
    %558 = vmatpush1.bf16.msra.mxu0 %v493
    %559 = vmatprep.mubr.bf16.mxu0 %v322
    %560 = vmatmul.mubr.bf16.gmra.mrb[0].mxu0 %v321
    %v561 = vpop.f32.mrb[0].mxu0
    %v562 = vadd.f32 %v360, %v561
    %v563 = vpop.f32.mrb[0].mxu0
    %v564 = vadd.f32 %v364, %v563
    %v565 = vpop.f32.mrb[0].mxu0
    %v566 = vadd.f32 %v360, %v565
    %v567 = vpop.f32.mrb[0].mxu0
    %v568 = vadd.f32 %v364, %v567
    %569 = vdwg.mxu0
    %570 = vst [vmem:[#allocation8] sm:$0xff] %v562
    %571 = vst [vmem:[#allocation8 + $0x8] sm:$0xff] %v564
    %572 = vst [vmem:[#allocation8 + $0x10] sm:$0xff] %v566
    %573 = vst [vmem:[#allocation8 + $0x18] sm:$0xff] %v568
    // Predicated region
    $region34: #{tpu_custom_call.1} parent=1 // pred_check
      _
    $region35: #{tpu_custom_call.1} parent=1 // pred_check_branch
      %575 = sbr.rel (0) target = $region37
    $region36: #{tpu_custom_call.1} parent=1 // pred_region
      %s577 = ssub.s32 512, 512
      %578 = vsyncadd [#allocation4], %s577
      %s579 = sshll.u32 [#allocation8], 4
      %s580 = int_to_ptr.vmem [resolvable:$true] %s579
      %585 = dma.vmem_to_hbm [thread:$0]  %s580, 512, %s5, [#allocation4], 256, 256, 16
    $region37: #{tpu_custom_call.1} parent=1 // pred_fallthru
      _
    // Predicated region
    $region38: #{tpu_custom_call.1} parent=1 // pred_check
      _
    $region39: #{tpu_custom_call.1} parent=1 // pred_check_branch
      %587 = sbr.rel (0) target = $region41
    $region40: #{tpu_custom_call.1} parent=1 // pred_region
      %588 = dma.done [#allocation4], 512
    $region41: #{tpu_custom_call.1} parent=1 // pred_fallthru
      _
    %589 = vsyncpa [#allocation3], 1
    %590 = vsyncpa [#allocation6], 1
    %591 = vsyncpa [#allocation4], 1

</llo_original>
